<compile_context>
chip_gen: v7x
topology: tpu7x:2x2x1
jax: 0.10.0
libtpu: 0.0.40
codegen_flags: <defaults>
</compile_context>

<pallas_src>
import jax
import jax.numpy as jnp
from jax.experimental import pallas as pl
from jax.experimental.pallas import tpu as pltpu


def _round_up(x, m):
    return ((x + m - 1) // m) * m


def _pick_tile(n_pad, cap=512):
    """Largest multiple of 128 that divides n_pad and is <= cap (128 always works)."""
    c = cap - (cap % 128)
    while c >= 128:
        if n_pad % c == 0:
            return c
        c -= 128
    return 128


def _vmem_limit(block_bytes):
    """Double-buffered working set + headroom, capped at ~75% of physical VMEM."""
    cap = 48 << 20  # safe on v7x (64 MiB physical); v5e/v6e have 128 MiB
    try:
        cap = int(0.75 * pltpu.get_tpu_info().vmem_capacity_bytes)
    except Exception:
        pass
    return int(min(max(2 * block_bytes + (8 << 20), 32 << 20), cap))


# ----------------------------------------------------------------------------
# Kernel 1: per-relation feature transform + self loop
#   HW[r, i_tile] = H[i_tile] @ W[r]          (bf16 out)
#   SL[i_tile]    = H[i_tile] @ W_loop + bias (fp32 out, written once at r == 0)
# grid = (num_dst_tiles, R): dst "parallel", relation "arbitrary"
# (H tile stays resident across relations; SL output block is revisited).
# ----------------------------------------------------------------------------
def _transform_kernel(h_ref, w_ref, wloop_ref, bias_ref, hw_ref, sl_ref):
    hw_ref[...] = jnp.dot(
        h_ref[...], w_ref[...], preferred_element_type=jnp.float32
    ).astype(hw_ref.dtype)

    @pl.when(pl.program_id(1) == 0)
    def _():
        sl_ref[...] = (
            jnp.dot(h_ref[...], wloop_ref[...], preferred_element_type=jnp.float32)
            + bias_ref[...]
        )


# ----------------------------------------------------------------------------
# Kernel 2: relation/source-tile reduction, fp32 accumulation in the out block
#   out[i] = SL[i] + sum_{r,k} A[r, i_tile, k_tile] @ HW[r, k_tile]
# grid = (num_dst_tiles, R, num_src_tiles): dst "parallel", r/k "arbitrary".
# ----------------------------------------------------------------------------
def _aggregate_kernel(a_ref, hw_ref, sl_ref, o_ref):
    r = pl.program_id(1)
    k = pl.program_id(2)

    @pl.when((r == 0) & (k == 0))
    def _():
        o_ref[...] = sl_ref[...]

    o_ref[...] += jnp.dot(a_ref[...], hw_ref[...], preferred_element_type=jnp.float32)


# ----------------------------------------------------------------------------
# One RelGraphConv layer
# ----------------------------------------------------------------------------
def relgraphconv(h, w, a_pad, w_loop, bias):
    """h: (N, D_in) f32, w: (R, D_in, D_out), a_pad: (R, n_pad, n_pad) bf16 (built once),
    w_loop: (D_in, D_out), bias: (1, D_out). Returns (N, D_out) f32."""
    N, d_in = h.shape
    R, _, d_out = w.shape

    if R == 0:  # degenerate: self-loop + bias only
        return h @ w_loop + bias

    n_pad = a_pad.shape[1]
    din_pad = _round_up(d_in, 128)
    dout_pad = _round_up(d_out, 128)
    tile_m = _pick_tile(n_pad, cap=512)   # dst-node tile
    tile_k = _pick_tile(n_pad, cap=512)   # source-node (contraction) tile
    num_m = n_pad // tile_m
    num_k = n_pad // tile_k

    bf16 = jnp.bfloat16
    hp = jnp.zeros((n_pad, din_pad), bf16).at[:N, :d_in].set(h.astype(bf16))
    wp = jnp.zeros((R, din_pad, dout_pad), bf16).at[:, :d_in, :d_out].set(w.astype(bf16))
    wlp = jnp.zeros((din_pad, dout_pad), bf16).at[:d_in, :d_out].set(w_loop.astype(bf16))
    bp = jnp.zeros((1, dout_pad), jnp.float32).at[:, :d_out].set(bias.astype(jnp.float32))

    # ---- Kernel 1: HW + SL -----------------------------------------------------
    k1_block_bytes = (
        tile_m * din_pad * 2            # H tile
        + 2 * din_pad * dout_pad * 2    # W[r] + W_loop
        + 8 * dout_pad * 4              # bias (sublane padded)
        + tile_m * dout_pad * 2         # HW out block
        + tile_m * dout_pad * 4         # SL out block
    )
    hw, sl = pl.pallas_call(
        _transform_kernel,
        out_shape=(
            jax.ShapeDtypeStruct((R, n_pad, dout_pad), bf16),
            jax.ShapeDtypeStruct((n_pad, dout_pad), jnp.float32),
        ),
        grid_spec=pltpu.PrefetchScalarGridSpec(
            num_scalar_prefetch=0,
            grid=(num_m, R),
            in_specs=[
                pl.BlockSpec((tile_m, din_pad), lambda i, r: (i, 0)),
                pl.BlockSpec((pl.Squeezed(), din_pad, dout_pad), lambda i, r: (r, 0, 0)),
                pl.BlockSpec((din_pad, dout_pad), lambda i, r: (0, 0)),
                pl.BlockSpec((1, dout_pad), lambda i, r: (0, 0)),
            ],
            out_specs=[
                pl.BlockSpec((pl.Squeezed(), tile_m, dout_pad), lambda i, r: (r, i, 0)),
                pl.BlockSpec((tile_m, dout_pad), lambda i, r: (i, 0)),
            ],
        ),
        compiler_params=pltpu.CompilerParams(
            dimension_semantics=("parallel", "arbitrary"),
            vmem_limit_bytes=_vmem_limit(k1_block_bytes),
        ),
        cost_estimate=pl.CostEstimate(
            flops=int(2 * (R + 1) * n_pad * din_pad * dout_pad),
            transcendentals=0,
            bytes_accessed=int(
                2 * n_pad * din_pad                       # H (resident across r)
                + 2 * num_m * R * din_pad * dout_pad      # W re-read per dst tile
                + 2 * R * n_pad * dout_pad                # HW write
                + 4 * n_pad * dout_pad                    # SL write
            ),
        ),
    )(hp, wp, wlp, bp)

    # ---- Kernel 2: out = SL + sum_{r,k} A[r] @ HW[r] -----------------------------
    k2_block_bytes = (
        tile_m * tile_k * 2             # A block
        + tile_k * dout_pad * 2         # HW block
        + tile_m * dout_pad * 4         # SL block
        + tile_m * dout_pad * 4         # fp32 out accumulator
    )
    out = pl.pallas_call(
        _aggregate_kernel,
        out_shape=jax.ShapeDtypeStruct((n_pad, dout_pad), jnp.float32),
        grid_spec=pltpu.PrefetchScalarGridSpec(
            num_scalar_prefetch=0,
            grid=(num_m, R, num_k),
            in_specs=[
                pl.BlockSpec((pl.Squeezed(), tile_m, tile_k), lambda i, r, k: (r, i, k)),
                pl.BlockSpec((pl.Squeezed(), tile_k, dout_pad), lambda i, r, k: (r, k, 0)),
                pl.BlockSpec((tile_m, dout_pad), lambda i, r, k: (i, 0)),
            ],
            out_specs=pl.BlockSpec((tile_m, dout_pad), lambda i, r, k: (i, 0)),
        ),
        compiler_params=pltpu.CompilerParams(
            dimension_semantics=("parallel", "arbitrary", "arbitrary"),
            vmem_limit_bytes=_vmem_limit(k2_block_bytes),
        ),
        cost_estimate=pl.CostEstimate(
            flops=int(2 * R * n_pad * n_pad * dout_pad),
            transcendentals=0,
            bytes_accessed=int(
                2 * R * n_pad * n_pad                     # A stream (dominant)
                + 2 * num_m * R * n_pad * dout_pad        # HW re-read per dst tile
                + 4 * n_pad * dout_pad                    # SL read
                + 4 * n_pad * dout_pad                    # out write
            ),
        ),
    )(a_pad, hw, sl)

    return out[:N, :d_out]


# ----------------------------------------------------------------------------
# Glue: graph -> normalized dense adjacency, built ONCE, padded + bf16
# (mirrors RGCN._compute_norm_coeff / _retrieve_norm)
# ----------------------------------------------------------------------------
def build_normalized_adjacency(src, dst, rid, num_nodes, num_rels, n_pad=None):
    if n_pad is None:
        n_pad = _round_up(num_nodes, 128)
    counts = jnp.zeros((num_nodes, num_rels), dtype=jnp.float32)
    counts = counts.at[dst, rid].add(1.0)
    norm = 1.0 / jnp.clip(counts[dst, rid], 1.0, None)
    adj = jnp.zeros((num_rels, n_pad, n_pad), dtype=jnp.float32)
    adj = adj.at[rid, dst, src].add(norm)
    # TODO(synk): int8 (v5e/v6e) or fp8-e4m3 (v7x) A with per-relation scales would
    # halve the dominant HBM stream again; needs a numerics check vs fp32 DGL.
    return adj.astype(jnp.bfloat16)


# ----------------------------------------------------------------------------
# RGCN forward (dropout p=0.0 -> identity; activation=None -> identity)
# ----------------------------------------------------------------------------
def rgcn_forward(node_feats, adj_pad, params, activation=None):
    # TODO(synk): the reference PyTorch forward calls `self._inp_layer(node_feats)`
    # without the graph/rid/norm args (would raise in DGL) and then returns the
    # unmodified input. We implement the evidently-intended semantics: run all
    # RelGraphConv layers with the shared norm and return the final node features.
    nfeats = node_feats
    w, w_loop, b = params[0]
    nfeats = relgraphconv(nfeats, w, adj_pad, w_loop, b)
    for (w, w_loop, b) in params[1:]:
        if activation is not None:
            nfeats = activation(nfeats)
        nfeats = relgraphconv(nfeats, w, adj_pad, w_loop, b)
    return nfeats


def init_params(key, input_size, hidden_size, num_rels, num_layers):
    params = []
    sizes = [(input_size, hidden_size)] + [
        (hidden_size, hidden_size) for _ in range(num_layers - 1)
    ]
    for (d_in, d_out) in sizes:
        key, k1, k2 = jax.random.split(key, 3)
        w = jax.random.normal(k1, (num_rels, d_in, d_out), jnp.float32) * 0.1
        w_loop = jax.random.normal(k2, (d_in, d_out), jnp.float32) * 0.1
        bias = jnp.zeros((1, d_out), jnp.float32)
        params.append((w, w_loop, bias))
    return params


# ----------------------------------------------------------------------------
# Pure-JAX reference (mirrors the kernel's bf16-input / f32-accumulate math)
# ----------------------------------------------------------------------------
def relgraphconv_ref(h, w, a_pad, w_loop, bias):
    N = h.shape[0]
    bf16 = jnp.bfloat16
    hb = h.astype(bf16).astype(jnp.float32)
    wb = w.astype(bf16).astype(jnp.float32)
    ab = a_pad[:, :N, :N].astype(jnp.float32)
    wlb = w_loop.astype(bf16).astype(jnp.float32)
    hw = jnp.einsum("nd,rde->rne", hb, wb).astype(bf16).astype(jnp.float32)
    agg = jnp.einsum("rvu,rue->ve", ab, hw)
    return agg + hb @ wlb + bias


def rgcn_forward_ref(node_feats, adj_pad, params, activation=None):
    nfeats = node_feats
    w, w_loop, b = params[0]
    nfeats = relgraphconv_ref(nfeats, w, adj_pad, w_loop, b)
    for (w, w_loop, b) in params[1:]:
        if activation is not None:
            nfeats = activation(nfeats)
        nfeats = relgraphconv_ref(nfeats, w, adj_pad, w_loop, b)
    return nfeats


if __name__ == "__main__":
    # Small synthetic graph / model sizes.
    num_nodes = 16
    num_edges = 48
    num_rels = 4
    input_size = 32
    hidden_size = 32
    num_layers = 2

    key = jax.random.PRNGKey(0)
    k_feat, k_src, k_dst, k_rid, k_params = jax.random.split(key, 5)

    node_feats = jax.random.normal(k_feat, (num_nodes, input_size), jnp.float32)
    src = jax.random.randint(k_src, (num_edges,), 0, num_nodes)
    dst = jax.random.randint(k_dst, (num_edges,), 0, num_nodes)
    rid = jax.random.randint(k_rid, (num_edges,), 0, num_rels)

    # Adjacency built once (padded, bf16) and reused for every layer.
    adj_pad = build_normalized_adjacency(src, dst, rid, num_nodes, num_rels)
    params = init_params(k_params, input_size, hidden_size, num_rels, num_layers)

    out = rgcn_forward(node_feats, adj_pad, params, activation=None)
    out = jax.block_until_ready(out)

    ref = rgcn_forward_ref(node_feats, adj_pad, params, activation=None)
    assert out.shape == (num_nodes, hidden_size)
    max_err = float(jnp.max(jnp.abs(out - ref)))
    assert jnp.allclose(out, ref, atol=2e-2, rtol=2e-2), (
        f"mismatch vs JAX reference (max abs err {max_err})"
    )

    print("KERNEL_OK")
</pallas_src>

<mosaic_0001>
module attributes {stable_mosaic.version = 11 : i64} {
  func.func @_transform_kernel(%arg0: i32, %arg1: i32, %arg2: memref<128x128xbf16, #tpu.memory_space<vmem>>, %arg3: memref<1x128x128xbf16, #tpu.memory_space<vmem>>, %arg4: memref<128x128xbf16, #tpu.memory_space<vmem>>, %arg5: memref<1x128xf32, #tpu.memory_space<vmem>>, %arg6: memref<1x128x128xbf16, #tpu.memory_space<vmem>>, %arg7: memref<128x128xf32, #tpu.memory_space<vmem>>) attributes {dimension_semantics = [#tpu.dimension_semantics<parallel>, #tpu.dimension_semantics<arbitrary>], iteration_bounds = array<i64: 1, 4>, scalar_prefetch = 0 : i64, scratch_operands = 0 : i64, tpu.core_type = #tpu.core_type<tc>, window_params = [{transform_indices = @transform_0, window_bounds = array<i64: 128, 128>}, {transform_indices = @transform_1, window_bounds = array<i64: 1, 128, 128>}, {pipeline_mode = #tpu.pipeline_mode<synchronous>, transform_indices = @transform_2, window_bounds = array<i64: 128, 128>}, {pipeline_mode = #tpu.pipeline_mode<synchronous>, transform_indices = @transform_3, window_bounds = array<i64: 1, 128>}, {transform_indices = @transform_4, window_bounds = array<i64: 1, 128, 128>}, {transform_indices = @transform_5, window_bounds = array<i64: 128, 128>}]} {
    %c0 = arith.constant 0 : index
    %c0_0 = arith.constant 0 : index
    %0 = vector.load %arg2[%c0, %c0_0] : memref<128x128xbf16, #tpu.memory_space<vmem>>, vector<128x128xbf16>
    %c0_1 = arith.constant 0 : index
    %c0_2 = arith.constant 0 : index
    %c0_3 = arith.constant 0 : index
    %1 = vector.load %arg3[%c0_1, %c0_2, %c0_3] : memref<1x128x128xbf16, #tpu.memory_space<vmem>>, vector<1x128x128xbf16>
    %2 = vector.shape_cast %1 : vector<1x128x128xbf16> to vector<128x128xbf16>
    %cst = arith.constant dense<0.000000e+00> : vector<128x128xf32>
    %3 = tpu.matmul %0, %2, %cst {dimension_numbers = #tpu.dot_dimension_numbers<[1], [0], [0], [1], [0, 0, 1, 1], [], []>} : vector<128x128xbf16>, vector<128x128xbf16>, vector<128x128xf32> -> vector<128x128xf32>
    %4 = arith.truncf %3 : vector<128x128xf32> to vector<128x128xbf16>
    %c0_4 = arith.constant 0 : index
    %c0_5 = arith.constant 0 : index
    %c0_6 = arith.constant 0 : index
    %5 = vector.load %arg6[%c0_4, %c0_5, %c0_6] : memref<1x128x128xbf16, #tpu.memory_space<vmem>>, vector<1x128x128xbf16>
    %6 = vector.shape_cast %5 : vector<1x128x128xbf16> to vector<128x128xbf16>
    %7 = vector.shape_cast %4 : vector<128x128xbf16> to vector<1x128x128xbf16>
    tpu.vector_store %arg6[%c0_4, %c0_5, %c0_6], %7 {strides = array<i32>} : memref<1x128x128xbf16, #tpu.memory_space<vmem>>, vector<1x128x128xbf16>,
    %c0_i32 = arith.constant 0 : i32
    %8 = arith.cmpi eq, %arg1, %c0_i32 : i32
    %9 = arith.extui %8 : i1 to i32
    %c0_i32_7 = arith.constant 0 : i32
    %10 = arith.cmpi ne, %9, %c0_i32_7 : i32
    scf.if %10 {
      %c0_8 = arith.constant 0 : index
      %c0_9 = arith.constant 0 : index
      %11 = vector.load %arg2[%c0_8, %c0_9] : memref<128x128xbf16, #tpu.memory_space<vmem>>, vector<128x128xbf16>
      %c0_10 = arith.constant 0 : index
      %c0_11 = arith.constant 0 : index
      %12 = vector.load %arg4[%c0_10, %c0_11] : memref<128x128xbf16, #tpu.memory_space<vmem>>, vector<128x128xbf16>
      %cst_12 = arith.constant dense<0.000000e+00> : vector<128x128xf32>
      %13 = tpu.matmul %11, %12, %cst_12 {dimension_numbers = #tpu.dot_dimension_numbers<[1], [0], [0], [1], [0, 0, 1, 1], [], []>} : vector<128x128xbf16>, vector<128x128xbf16>, vector<128x128xf32> -> vector<128x128xf32>
      %c0_13 = arith.constant 0 : index
      %c0_14 = arith.constant 0 : index
      %14 = vector.load %arg5[%c0_13, %c0_14] : memref<1x128xf32, #tpu.memory_space<vmem>>, vector<1x128xf32>
      %15 = vector.broadcast %14 : vector<1x128xf32> to vector<128x128xf32>
      %16 = arith.addf %13, %15 : vector<128x128xf32>
      %c0_15 = arith.constant 0 : index
      %c0_16 = arith.constant 0 : index
      %17 = vector.load %arg7[%c0_15, %c0_16] : memref<128x128xf32, #tpu.memory_space<vmem>>, vector<128x128xf32>
      tpu.vector_store %arg7[%c0_15, %c0_16], %16 {strides = array<i32>} : memref<128x128xf32, #tpu.memory_space<vmem>>, vector<128x128xf32>,
    } else {
    }
    return
  }
  func.func @transform_0(%arg0: i32, %arg1: i32) -> (i32, i32) {
    %c0_i32 = arith.constant 0 : i32
    %c0_i32_0 = arith.constant 0 : i32
    return %arg0, %c0_i32 : i32, i32
  }
  func.func @transform_1(%arg0: i32, %arg1: i32) -> (i32, i32, i32) {
    %c0_i32 = arith.constant 0 : i32
    %c0_i32_0 = arith.constant 0 : i32
    %c0_i32_1 = arith.constant 0 : i32
    return %arg1, %c0_i32, %c0_i32_0 : i32, i32, i32
  }
  func.func @transform_2(%arg0: i32, %arg1: i32) -> (i32, i32) {
    %c0_i32 = arith.constant 0 : i32
    %c0_i32_0 = arith.constant 0 : i32
    %c0_i32_1 = arith.constant 0 : i32
    return %c0_i32, %c0_i32_0 : i32, i32
  }
  func.func @transform_3(%arg0: i32, %arg1: i32) -> (i32, i32) {
    %c0_i32 = arith.constant 0 : i32
    %c0_i32_0 = arith.constant 0 : i32
    %c0_i32_1 = arith.constant 0 : i32
    return %c0_i32, %c0_i32_0 : i32, i32
  }
  func.func @transform_4(%arg0: i32, %arg1: i32) -> (i32, i32, i32) {
    %c0_i32 = arith.constant 0 : i32
    %c0_i32_0 = arith.constant 0 : i32
    return %arg1, %arg0, %c0_i32 : i32, i32, i32
  }
  func.func @transform_5(%arg0: i32, %arg1: i32) -> (i32, i32) {
    %c0_i32 = arith.constant 0 : i32
    %c0_i32_0 = arith.constant 0 : i32
    return %arg0, %c0_i32 : i32, i32
  }
}

</mosaic_0001>

<llo_original>
// kernel: tpu_custom_call.1
$region0: #{tpu_custom_call.1}
  #allocation0 [shape = 'u32[]', space=smem, size = 0x4, offset = 0x4, fixed_abs, tag = 'smem constant byte address 0x4 - core index']
  #allocation1 [shape = 'u32[144,128]{1,0:T(1,128)}', space=vmem, size = 0x12000, scoped, tag = 'internal scratch']
  %s0 = inlined_call_operand.hbm [shape: bf16[128,128], index: 0, kind: input, shape index: {}]
  %s1 = inlined_call_operand.hbm [shape: bf16[4,128,128], index: 1, kind: input, shape index: {}]
  %s2 = inlined_call_operand.hbm [shape: bf16[128,128], index: 2, kind: input, shape index: {}]
  %s3 = inlined_call_operand.vmem [shape: f32[1,128], index: 3, kind: input, shape index: {}]
  %s4 = inlined_call_operand.hbm [shape: bf16[4,128,128], index: 4, kind: output, shape index: {0}]
  %s5 = inlined_call_operand.hbm [shape: f32[128,128], index: 5, kind: output, shape index: {1}]
  %6 = xla_tuple %s4, %s5
  %s7 = sld [smem:[#allocation0]]
  $region73: #{tpu_custom_call.1} parent=0
    _
  %s9 = ssub.s32 1, %s7
  %s10 = scalar_select 0, %s9, %s7
  $region1: #{tpu_custom_call.1} parent=0
    #allocation2 [shape = 'u8[32768]{0}', space=vmem, size = 0x8000, scoped, tag = 'input window, operand 0, single buffered']
    #allocation3 [shape = 's32[2]{0}', space=sflag, size = 0x8, scoped, tag = 'scoped memory for tpu_custom_call.1']
    #allocation4 [shape = 's32[2]{0}', space=sflag, size = 0x8, scoped, tag = 'scoped memory for tpu_custom_call.1']
    #allocation5 [shape = 'u8[65536]{0}', space=vmem, size = 0x10000, scoped, tag = 'input window, operand 1']
    #allocation6 [shape = 's32[2]{0}', space=sflag, size = 0x8, scoped, tag = 'scoped memory for tpu_custom_call.1']
    #allocation7 [shape = 'u8[32768]{0}', space=vmem, size = 0x8000, scoped, tag = 'input window, operand 2, single buffered']
    #allocation8 [shape = 'u8[65536]{0}', space=vmem, size = 0x10000, scoped, tag = 'output window, operand 0']
    #allocation9 [shape = 'u8[65536]{0}', space=vmem, size = 0x10000, scoped, tag = 'output window, operand 1, single buffered']
    #allocation10 [shape = 's32[1]{0}', space=sflag, size = 0x4, scoped, tag = 'scoped memory for tpu_custom_call.1']
    %11 = vsyncpa [#allocation3], 0
    %12 = vsyncpa [#allocation6], 0
    %s13 = scalar_lea.sflag [#allocation6], 1
    %14 = vsyncpa %s13, 0
    %15 = vsyncpa [#allocation4], 0
    %s16 = scalar_lea.sflag [#allocation4], 1
    %17 = vsyncpa %s16, 0
    %18 = vsyncpa [#allocation10], 0
    loop: start=0, step=1, limit=6
    $region2: #{tpu_custom_call.1} parent=1 // loop_pre_header
      _
    $region3: #{tpu_custom_call.1} parent=1 // loop_header
      %s20 = sphi 0, %s24
      %p21 = scmp.ge.s32.totalorder %s20, 6
      %s27 = sphi 0, %s39
      %s28 = sphi 0, %s35
      %s29 = sphi 0, %s27
      %s30 = sphi 0, %s28
      %s31 = sphi 0, %s29
      %s32 = sphi 0, %s30
      %s42 = sphi 0, %s44
      %s45 = sphi 0, %s42
      %s46 = sphi 0, %s45
      %s62 = sphi 0, %s46
      %s68 = sphi 0, %s70
      %s71 = sphi 0, %s68
      %s72 = sphi 0, %s71
      %s88 = sphi 0, %s72
      %s92 = sphi 0, %s92
      %s94 = sphi 0, %s92
      %s95 = sphi 0, %s94
      %s109 = sphi 0, %s95
      %s113 = sphi 0, %s113
      %s115 = sphi 0, %s113
      %s116 = sphi 0, %s115
      %s130 = sphi 0, %s116
      %s138 = sphi 0, %s140
      %s141 = sphi 0, %s138
      %s142 = sphi 0, %s141
      %s158 = sphi 0, %s142
      %s164 = sphi 0, %s166
      %s167 = sphi 0, %s164
      %s168 = sphi 0, %s167
      %s184 = sphi 0, %s168
    $region4: #{tpu_custom_call.1} parent=1 // loop_header_branch
      %23 = sbr.rel (%p21) target = $region8
    $region5: #{tpu_custom_call.1} parent=1 // loop_body
      %s25 = ssub.s32 %s20, 1
      %s26 = ssub.s32 %s20, 2
      %s33 = sadd.s32 1, %s28
      %p34 = scmp.ge.s32.totalorder %s33, 4
      %s35 = scalar_select %p34, 0, %s33
      %s36 = sadd.s32 1, %s27
      %s37 = scalar_select %p34, %s36, %s27
      %p38 = scmp.ge.s32.totalorder %s37, 1
      %s39 = scalar_select %p38, 0, %s37
      %s40 = ssub.s32 %s27, %s39
      %p41 = scmp.eq.s32.totalorder %s40, 0
      %s43 = sadd.s32 %s42, 1
      %s44 = scalar_select %p41, %s42, %s43
      %p47 = pneg %p41
      %p48 = scmp.eq.s32.totalorder %s20, 3
      %p49 = por %p47, %p48
      %p50 = scmp.ne.s32.totalorder %s42, %s45
      %p51 = scmp.eq.s32.totalorder %s20, 0
      %p52 = por %p50, %p51
      %p53 = scmp.ne.s32.totalorder %s42, %s45
      %p54 = scmp.eq.s32.totalorder %s25, 3
      %p55 = por %p53, %p54
      %p56 = scmp.ne.s32.totalorder %s45, %s46
      %p57 = scmp.eq.s32.totalorder %s25, 0
      %p58 = por %p56, %p57
      %p59 = scmp.ne.s32.totalorder %s45, %s46
      %p60 = scmp.eq.s32.totalorder %s26, 3
      %p61 = por %p59, %p60
      %p63 = scmp.ne.s32.totalorder %s46, %s62
      %p64 = scmp.eq.s32.totalorder %s26, 0
      %p65 = por %p63, %p64
      %s66 = ssub.s32 %s28, %s35
      %p67 = scmp.eq.s32.totalorder %s66, 0
      %s69 = sadd.s32 %s68, 1
      %s70 = scalar_select %p67, %s68, %s69
      %p73 = pneg %p67
      %p74 = scmp.eq.s32.totalorder %s20, 3
      %p75 = por %p73, %p74
      %p76 = scmp.ne.s32.totalorder %s68, %s71
      %p77 = scmp.eq.s32.totalorder %s20, 0
      %p78 = por %p76, %p77
      %p79 = scmp.ne.s32.totalorder %s68, %s71
      %p80 = scmp.eq.s32.totalorder %s25, 3
      %p81 = por %p79, %p80
      %p82 = scmp.ne.s32.totalorder %s71, %s72
      %p83 = scmp.eq.s32.totalorder %s25, 0
      %p84 = por %p82, %p83
      %p85 = scmp.ne.s32.totalorder %s71, %s72
      %p86 = scmp.eq.s32.totalorder %s26, 3
      %p87 = por %p85, %p86
      %p89 = scmp.ne.s32.totalorder %s72, %s88
      %p90 = scmp.eq.s32.totalorder %s26, 0
      %p91 = por %p89, %p90
      %s93 = sadd.s32 %s92, 1
      %p96 = scmp.eq.s32.totalorder %s20, 3
      %p97 = scmp.ne.s32.totalorder %s92, %s94
      %p98 = scmp.eq.s32.totalorder %s20, 0
      %p99 = por %p97, %p98
      %p100 = scmp.ne.s32.totalorder %s92, %s94
      %p101 = scmp.eq.s32.totalorder %s25, 3
      %p102 = por %p100, %p101
      %p103 = scmp.ne.s32.totalorder %s94, %s95
      %p104 = scmp.eq.s32.totalorder %s25, 0
      %p105 = por %p103, %p104
      %p106 = scmp.ne.s32.totalorder %s94, %s95
      %p107 = scmp.eq.s32.totalorder %s26, 3
      %p108 = por %p106, %p107
      %p110 = scmp.ne.s32.totalorder %s95, %s109
      %p111 = scmp.eq.s32.totalorder %s26, 0
      %p112 = por %p110, %p111
      %s114 = sadd.s32 %s113, 1
      %p117 = scmp.eq.s32.totalorder %s20, 3
      %p118 = scmp.ne.s32.totalorder %s113, %s115
      %p119 = scmp.eq.s32.totalorder %s20, 0
      %p120 = por %p118, %p119
      %p121 = scmp.ne.s32.totalorder %s113, %s115
      %p122 = scmp.eq.s32.totalorder %s25, 3
      %p123 = por %p121, %p122
      %p124 = scmp.ne.s32.totalorder %s115, %s116
      %p125 = scmp.eq.s32.totalorder %s25, 0
      %p126 = por %p124, %p125
      %p127 = scmp.ne.s32.totalorder %s115, %s116
      %p128 = scmp.eq.s32.totalorder %s26, 3
      %p129 = por %p127, %p128
      %p131 = scmp.ne.s32.totalorder %s116, %s130
      %p132 = scmp.eq.s32.totalorder %s26, 0
      %p133 = por %p131, %p132
      %s134 = ssub.s32 %s28, %s35
      %s135 = ssub.s32 %s27, %s39
      %s136 = sor.u32 %s134, %s135
      %p137 = scmp.eq.s32.totalorder %s136, 0
      %s139 = sadd.s32 %s138, 1
      %s140 = scalar_select %p137, %s138, %s139
      %p143 = pneg %p137
      %p144 = scmp.eq.s32.totalorder %s20, 3
      %p145 = por %p143, %p144
      %p146 = scmp.ne.s32.totalorder %s138, %s141
      %p147 = scmp.eq.s32.totalorder %s20, 0
      %p148 = por %p146, %p147
      %p149 = scmp.ne.s32.totalorder %s138, %s141
      %p150 = scmp.eq.s32.totalorder %s25, 3
      %p151 = por %p149, %p150
      %p152 = scmp.ne.s32.totalorder %s141, %s142
      %p153 = scmp.eq.s32.totalorder %s25, 0
      %p154 = por %p152, %p153
      %p155 = scmp.ne.s32.totalorder %s141, %s142
      %p156 = scmp.eq.s32.totalorder %s26, 3
      %p157 = por %p155, %p156
      %p159 = scmp.ne.s32.totalorder %s142, %s158
      %p160 = scmp.eq.s32.totalorder %s26, 0
      %p161 = por %p159, %p160
      %s162 = ssub.s32 %s27, %s39
      %p163 = scmp.eq.s32.totalorder %s162, 0
      %s165 = sadd.s32 %s164, 1
      %s166 = scalar_select %p163, %s164, %s165
      %p169 = pneg %p163
      %p170 = scmp.eq.s32.totalorder %s20, 3
      %p171 = por %p169, %p170
      %p172 = scmp.ne.s32.totalorder %s164, %s167
      %p173 = scmp.eq.s32.totalorder %s20, 0
      %p174 = por %p172, %p173
      %p175 = scmp.ne.s32.totalorder %s164, %s167
      %p176 = scmp.eq.s32.totalorder %s25, 3
      %p177 = por %p175, %p176
      %p178 = scmp.ne.s32.totalorder %s167, %s168
      %p179 = scmp.eq.s32.totalorder %s25, 0
      %p180 = por %p178, %p179
      %p181 = scmp.ne.s32.totalorder %s167, %s168
      %p182 = scmp.eq.s32.totalorder %s26, 3
      %p183 = por %p181, %p182
      %p185 = scmp.ne.s32.totalorder %s168, %s184
      %p186 = scmp.eq.s32.totalorder %s26, 0
      %p187 = por %p185, %p186
      %p188 = scmp.le.s32.totalorder 1, %s20
      %p189 = scmp.lt.s32.totalorder %s20, 5
      %p190 = pnand %p188, %p189
      %p191 = pneg %p190
      // Predicated region
      $region9: #{tpu_custom_call.1} parent=5 // pred_check
        _
      $region10: #{tpu_custom_call.1} parent=5 // pred_check_branch
        %193 = sbr.rel (%p190) target = $region12
      $region11: #{tpu_custom_call.1} parent=5 // pred_region
        %s194 = ssub.s32 %s20, 1
        // Predicated region
        $region13: #{tpu_custom_call.1} parent=11 // pred_check
          %p195 = pneg %p58
        $region14: #{tpu_custom_call.1} parent=11 // pred_check_branch
          %197 = sbr.rel (%p195) target = $region16
        $region15: #{tpu_custom_call.1} parent=11 // pred_region
          %s198 = smul.u32 16, %s29
          %s200 = ssub.s32 1024, 1024
          %201 = vsyncadd [#allocation3], %s200
          %s202 = smul.addr %s198, 64
          %s203 = scalar_lea.hbm %s0, %s202
          %s204 = sshll.u32 [#allocation2], 4
          %s205 = int_to_ptr.vmem [resolvable:$true] %s204
          %210 = dma.hbm_to_vmem [thread:$0]  %s203, 1024, %s205, [#allocation3], 64, 64, 4
        $region16: #{tpu_custom_call.1} parent=11 // pred_fallthru
          _
        // Predicated region
        $region17: #{tpu_custom_call.1} parent=11 // pred_check
          %p211 = pneg %p105
        $region18: #{tpu_custom_call.1} parent=11 // pred_check_branch
          %213 = sbr.rel (%p211) target = $region20
        $region19: #{tpu_custom_call.1} parent=11 // pred_region
          %s215 = ssub.s32 1024, 1024
          %216 = vsyncadd [#allocation6], %s215
          %s217 = sshll.u32 [#allocation7], 4
          %s218 = int_to_ptr.vmem [resolvable:$true] %s217
          %223 = dma.hbm_to_vmem [thread:$0]  %s2, 1024, %s218, [#allocation6], 64, 64, 4
        $region20: #{tpu_custom_call.1} parent=11 // pred_fallthru
          _
        // Predicated region
        $region21: #{tpu_custom_call.1} parent=11 // pred_check
          %p224 = pneg %p126
        $region22: #{tpu_custom_call.1} parent=11 // pred_check_branch
          %226 = sbr.rel (%p224) target = $region24
        $region23: #{tpu_custom_call.1} parent=11 // pred_region
          _
        $region24: #{tpu_custom_call.1} parent=11 // pred_fallthru
          _
      $region12: #{tpu_custom_call.1} parent=5 // pred_fallthru
        _
      %p227 = scmp.lt.s32.totalorder %s20, 4
      // Predicated region
      $region25: #{tpu_custom_call.1} parent=5 // pred_check
        %p228 = pneg %p227
      $region26: #{tpu_custom_call.1} parent=5 // pred_check_branch
        %230 = sbr.rel (%p228) target = $region28
      $region27: #{tpu_custom_call.1} parent=5 // pred_region
        // Predicated region
        $region29: #{tpu_custom_call.1} parent=27 // pred_check
          %p231 = pneg %p78
        $region30: #{tpu_custom_call.1} parent=27 // pred_check_branch
          %233 = sbr.rel (%p231) target = $region32
        $region31: #{tpu_custom_call.1} parent=27 // pred_region
          %s234 = sand.u32 %s20, 1
          %s235 = scalar_lea.sflag [#allocation6], %s234
          %s236 = sand.u32 %s68, 1
          %s237 = smul.addr %s236, 64
          %s238 = scalar_lea.vmem [#allocation5], %s237
          %s240 = ssub.s32 1024, 1024
          %241 = vsyncadd %s235, %s240
          %s242 = smul.addr %s28, 16
          %s243 = smul.addr %s242, 64
          %s244 = scalar_lea.hbm %s1, %s243
          %s245 = sshll.u32 %s238, 4
          %s246 = int_to_ptr.vmem [resolvable:$true] %s245
          %251 = dma.hbm_to_vmem [thread:$0]  %s244, 1024, %s246, %s235, 64, 64, 4
        $region32: #{tpu_custom_call.1} parent=27 // pred_fallthru
          _
      $region28: #{tpu_custom_call.1} parent=5 // pred_fallthru
        _
      %p252 = scmp.le.s32.totalorder 1, %s20
      %p253 = scmp.lt.s32.totalorder %s20, 5
      %p254 = pnand %p252, %p253
      %p255 = pneg %p254
      // Predicated region
      $region33: #{tpu_custom_call.1} parent=5 // pred_check
        _
      $region34: #{tpu_custom_call.1} parent=5 // pred_check_branch
        %257 = sbr.rel (%p254) target = $region36
      $region35: #{tpu_custom_call.1} parent=5 // pred_region
        %s258 = ssub.s32 %s20, 1
        // Predicated region
        $region37: #{tpu_custom_call.1} parent=35 // pred_check
          %p259 = pneg %p58
        $region38: #{tpu_custom_call.1} parent=35 // pred_check_branch
          %261 = sbr.rel (%p259) target = $region40
        $region39: #{tpu_custom_call.1} parent=35 // pred_region
          %262 = dma.done [#allocation3], 1024
        $region40: #{tpu_custom_call.1} parent=35 // pred_fallthru
          _
        %s263 = sand.u32 %s25, 1
        %s264 = scalar_lea.sflag [#allocation6], %s263
        %s265 = sand.u32 %s71, 1
        %s266 = smul.addr %s265, 64
        %s267 = scalar_lea.vmem [#allocation5], %s266
        // Predicated region
        $region41: #{tpu_custom_call.1} parent=35 // pred_check
          %p268 = pneg %p84
        $region42: #{tpu_custom_call.1} parent=35 // pred_check_branch
          %270 = sbr.rel (%p268) target = $region44
        $region43: #{tpu_custom_call.1} parent=35 // pred_region
          %271 = dma.done %s264, 1024
        $region44: #{tpu_custom_call.1} parent=35 // pred_fallthru
          _
        // Predicated region
        $region45: #{tpu_custom_call.1} parent=35 // pred_check
          %p272 = pneg %p105
        $region46: #{tpu_custom_call.1} parent=35 // pred_check_branch
          %274 = sbr.rel (%p272) target = $region48
        $region47: #{tpu_custom_call.1} parent=35 // pred_region
          %275 = dma.done [#allocation6], 1024
        $region48: #{tpu_custom_call.1} parent=35 // pred_fallthru
          _
        %p276 = pneg %p58
        %p277 = pneg %p55
        %s278 = sand.u32 %s25, 1
        %s279 = scalar_lea.sflag [#allocation6], %s278
        %s280 = sand.u32 %s71, 1
        %s281 = smul.addr %s280, 64
        %s282 = scalar_lea.vmem [#allocation5], %s281
        %p283 = pneg %p84
        %p284 = pneg %p81
        %p285 = pneg %p105
        %p286 = pneg %p102
        %p287 = pneg %p126
        %p288 = pneg %p123
        %p289 = pneg %p154
        %p290 = pneg %p151
        %s291 = sand.u32 %s141, 1
        %s292 = scalar_lea.sflag [#allocation4], %s291
        %s293 = sand.u32 %s141, 1
        %s294 = smul.addr %s293, 64
        %s295 = scalar_lea.vmem [#allocation8], %s294
        %p296 = pneg %p180
        %p297 = pneg %p177
        %s298 = smul.u32 16, %s29
        %s299 = smul.u32 16, %s29
        %s300 = smul.u32 16, %s29
        %v302 = vld [vmem:[#allocation2] sm:$0xf]
        %v303 = vld [vmem:[#allocation2 + $0x4] sm:$0xf]
        %v304 = vld [vmem:[#allocation2 + $0x8] sm:$0xf]
        %v305 = vld [vmem:[#allocation2 + $0xc] sm:$0xf]
        %v306 = vld [vmem:[#allocation2 + $0x10] sm:$0xf]
        %v307 = vld [vmem:[#allocation2 + $0x14] sm:$0xf]
        %v308 = vld [vmem:[#allocation2 + $0x18] sm:$0xf]
        %v309 = vld [vmem:[#allocation2 + $0x1c] sm:$0xf]
        %v310 = vld [vmem:[#allocation2 + $0x20] sm:$0xf]
        %v311 = vld [vmem:[#allocation2 + $0x24] sm:$0xf]
        %v312 = vld [vmem:[#allocation2 + $0x28] sm:$0xf]
        %v313 = vld [vmem:[#allocation2 + $0x2c] sm:$0xf]
        %v314 = vld [vmem:[#allocation2 + $0x30] sm:$0xf]
        %v315 = vld [vmem:[#allocation2 + $0x34] sm:$0xf]
        %v316 = vld [vmem:[#allocation2 + $0x38] sm:$0xf]
        %v317 = vld [vmem:[#allocation2 + $0x3c] sm:$0xf]
        %v318 = vld [vmem:[%s267] sm:$0xf]
        %v319 = vld [vmem:[%s267 + $0x4] sm:$0xf]
        %v320 = vld [vmem:[%s267 + $0x8] sm:$0xf]
        %v321 = vld [vmem:[%s267 + $0xc] sm:$0xf]
        %v322 = vld [vmem:[%s267 + $0x10] sm:$0xf]
        %v323 = vld [vmem:[%s267 + $0x14] sm:$0xf]
        %v324 = vld [vmem:[%s267 + $0x18] sm:$0xf]
        %v325 = vld [vmem:[%s267 + $0x1c] sm:$0xf]
        %v326 = vld [vmem:[%s267 + $0x20] sm:$0xf]
        %v327 = vld [vmem:[%s267 + $0x24] sm:$0xf]
        %v328 = vld [vmem:[%s267 + $0x28] sm:$0xf]
        %v329 = vld [vmem:[%s267 + $0x2c] sm:$0xf]
        %v330 = vld [vmem:[%s267 + $0x30] sm:$0xf]
        %v331 = vld [vmem:[%s267 + $0x34] sm:$0xf]
        %v332 = vld [vmem:[%s267 + $0x38] sm:$0xf]
        %v333 = vld [vmem:[%s267 + $0x3c] sm:$0xf]
        %v350 = vunpack.c.l.b16 %v302
        %v351 = vunpack.c.l.b16 %v303
        %v352 = vunpack.c.l.b16 %v304
        %v353 = vunpack.c.l.b16 %v305
        %v354 = vunpack.c.l.b16 %v306
        %v355 = vunpack.c.l.b16 %v307
        %v356 = vunpack.c.l.b16 %v308
        %v357 = vunpack.c.l.b16 %v309
        %v358 = vunpack.c.l.b16 %v310
        %v359 = vunpack.c.l.b16 %v311
        %v360 = vunpack.c.l.b16 %v312
        %v361 = vunpack.c.l.b16 %v313
        %v362 = vunpack.c.l.b16 %v314
        %v363 = vunpack.c.l.b16 %v315
        %v364 = vunpack.c.l.b16 %v316
        %v365 = vunpack.c.l.b16 %v317
        %v366 = vpack.c.b16 %v351, %v350
        %v367 = vpack.c.b16 %v353, %v352
        %v368 = vpack.c.b16 %v355, %v354
        %v369 = vpack.c.b16 %v357, %v356
        %v370 = vpack.c.b16 %v359, %v358
        %v371 = vpack.c.b16 %v361, %v360
        %v372 = vpack.c.b16 %v363, %v362
        %v373 = vpack.c.b16 %v365, %v364
        %v398 = vunpack.c.l.b16 %v318
        %v399 = vunpack.c.l.b16 %v319
        %v400 = vunpack.c.l.b16 %v320
        %v401 = vunpack.c.l.b16 %v321
        %v402 = vunpack.c.l.b16 %v322
        %v403 = vunpack.c.l.b16 %v323
        %v404 = vunpack.c.l.b16 %v324
        %v405 = vunpack.c.l.b16 %v325
        %v406 = vunpack.c.l.b16 %v326
        %v407 = vunpack.c.l.b16 %v327
        %v408 = vunpack.c.l.b16 %v328
        %v409 = vunpack.c.l.b16 %v329
        %v410 = vunpack.c.l.b16 %v330
        %v411 = vunpack.c.l.b16 %v331
        %v412 = vunpack.c.l.b16 %v332
        %v413 = vunpack.c.l.b16 %v333
        %v414 = vpack.c.b16 %v399, %v398
        %v415 = vpack.c.b16 %v401, %v400
        %v416 = vpack.c.b16 %v403, %v402
        %v417 = vpack.c.b16 %v405, %v404
        %v418 = vpack.c.b16 %v407, %v406
        %v419 = vpack.c.b16 %v409, %v408
        %v420 = vpack.c.b16 %v411, %v410
        %v421 = vpack.c.b16 %v413, %v412
        %430 = vmatprep.subr.bf16.mxu0 0
        %431 = vmatpush1.bf16.msra.mxu0 %v414
        %432 = vmatprep.subr.bf16.mxu0 0
        %433 = vmatpush1.bf16.msra.mxu0 %v415
        %434 = vmatprep.subr.bf16.mxu0 0
        %435 = vmatpush1.bf16.msra.mxu0 %v416
        %436 = vmatprep.subr.bf16.mxu0 0
        %437 = vmatpush1.bf16.msra.mxu0 %v417
        %438 = vmatprep.subr.bf16.mxu0 0
        %439 = vmatpush1.bf16.msra.mxu0 %v418
        %440 = vmatprep.subr.bf16.mxu0 0
        %441 = vmatpush1.bf16.msra.mxu0 %v419
        %442 = vmatprep.subr.bf16.mxu0 0
        %443 = vmatpush1.bf16.msra.mxu0 %v420
        %444 = vmatprep.subr.bf16.mxu0 0
        %445 = vmatpush1.bf16.msra.mxu0 %v421
        %446 = vmatprep.subr.bf16.mxu0 0
        %447 = vmatpush1.bf16.msra.mxu0 0
        %448 = vmatprep.subr.bf16.mxu0 0
        %449 = vmatpush1.bf16.msra.mxu0 0
        %450 = vmatprep.subr.bf16.mxu0 0
        %451 = vmatpush1.bf16.msra.mxu0 0
        %452 = vmatprep.subr.bf16.mxu0 0
        %453 = vmatpush1.bf16.msra.mxu0 0
        %454 = vmatprep.subr.bf16.mxu0 0
        %455 = vmatpush1.bf16.msra.mxu0 0
        %456 = vmatprep.subr.bf16.mxu0 0
        %457 = vmatpush1.bf16.msra.mxu0 0
        %458 = vmatprep.subr.bf16.mxu0 0
        %459 = vmatpush1.bf16.msra.mxu0 0
        %460 = vmatprep.subr.bf16.mxu0 0
        %461 = vmatpush1.bf16.msra.mxu0 0
        %462 = vmatprep.mubr.bf16.mxu0 0
        %463 = vmatmul.mubr.bf16.gmra.mrb[0].mxu0 %v366
        %v464 = vpop.f32.mrb[0].mxu0
        %v465 = vadd.f32 0.0, %v464
        %v466 = vpop.f32.mrb[0].mxu0
        %v467 = vpop.f32.mrb[0].mxu0
        %v468 = vadd.f32 0.0, %v467
        %v469 = vpop.f32.mrb[0].mxu0
        %470 = vmatprep.mubr.bf16.mxu0 0
        %471 = vmatmul.mubr.bf16.gmra.mrb[0].mxu0 %v367
        %v472 = vpop.f32.mrb[0].mxu0
        %v473 = vadd.f32 0.0, %v472
        %v474 = vpop.f32.mrb[0].mxu0
        %v475 = vpop.f32.mrb[0].mxu0
        %v476 = vadd.f32 0.0, %v475
        %v477 = vpop.f32.mrb[0].mxu0
        %478 = vmatprep.mubr.bf16.mxu0 0
        %479 = vmatmul.mubr.bf16.gmra.mrb[0].mxu0 %v368
        %v480 = vpop.f32.mrb[0].mxu0
        %v481 = vadd.f32 0.0, %v480
        %v482 = vpop.f32.mrb[0].mxu0
        %v483 = vpop.f32.mrb[0].mxu0
        %v484 = vadd.f32 0.0, %v483
        %v485 = vpop.f32.mrb[0].mxu0
        %486 = vmatprep.mubr.bf16.mxu0 0
        %487 = vmatmul.mubr.bf16.gmra.mrb[0].mxu0 %v369
        %v488 = vpop.f32.mrb[0].mxu0
        %v489 = vadd.f32 0.0, %v488
        %v490 = vpop.f32.mrb[0].mxu0
        %v491 = vpop.f32.mrb[0].mxu0
        %v492 = vadd.f32 0.0, %v491
        %v493 = vpop.f32.mrb[0].mxu0
        %494 = vmatprep.mubr.bf16.mxu0 0
        %495 = vmatmul.mubr.bf16.gmra.mrb[0].mxu0 %v370
        %v496 = vpop.f32.mrb[0].mxu0
        %v497 = vadd.f32 0.0, %v496
        %v498 = vpop.f32.mrb[0].mxu0
        %v499 = vpop.f32.mrb[0].mxu0
        %v500 = vadd.f32 0.0, %v499
        %v501 = vpop.f32.mrb[0].mxu0
        %502 = vmatprep.mubr.bf16.mxu0 0
        %503 = vmatmul.mubr.bf16.gmra.mrb[0].mxu0 %v371
        %v504 = vpop.f32.mrb[0].mxu0
        %v505 = vadd.f32 0.0, %v504
        %v506 = vpop.f32.mrb[0].mxu0
        %v507 = vpop.f32.mrb[0].mxu0
        %v508 = vadd.f32 0.0, %v507
        %v509 = vpop.f32.mrb[0].mxu0
        %510 = vmatprep.mubr.bf16.mxu0 0
        %511 = vmatmul.mubr.bf16.gmra.mrb[0].mxu0 %v372
        %v512 = vpop.f32.mrb[0].mxu0
        %v513 = vadd.f32 0.0, %v512
        %v514 = vpop.f32.mrb[0].mxu0
        %v515 = vpop.f32.mrb[0].mxu0
        %v516 = vadd.f32 0.0, %v515
        %v517 = vpop.f32.mrb[0].mxu0
        %518 = vmatprep.mubr.bf16.mxu0 0
        %519 = vmatmul.mubr.bf16.gmra.mrb[0].mxu0 %v373
        %v520 = vpop.f32.mrb[0].mxu0
        %v521 = vadd.f32 0.0, %v520
        %v522 = vpop.f32.mrb[0].mxu0
        %v523 = vpop.f32.mrb[0].mxu0
        %v524 = vadd.f32 0.0, %v523
        %v525 = vpop.f32.mrb[0].mxu0
        %526 = vdwg.mxu0
        %v527 = vpack.c.bf16 %v468, %v465
        %v528 = vpack.c.bf16 %v476, %v473
        %v529 = vpack.c.bf16 %v484, %v481
        %v530 = vpack.c.bf16 %v492, %v489
        %v531 = vpack.c.bf16 %v500, %v497
        %v532 = vpack.c.bf16 %v508, %v505
        %v533 = vpack.c.bf16 %v516, %v513
        %v534 = vpack.c.bf16 %v524, %v521
        %v543 = vunpack.c.l.b16 %v527
        %v544 = vunpack.c.h.b16 %v527
        %v545 = vunpack.c.l.b16 %v528
        %v546 = vunpack.c.h.b16 %v528
        %v547 = vunpack.c.l.b16 %v529
        %v548 = vunpack.c.h.b16 %v529
        %v549 = vunpack.c.l.b16 %v530
        %v550 = vunpack.c.h.b16 %v530
        %v551 = vunpack.c.l.b16 %v531
        %v552 = vunpack.c.h.b16 %v531
        %v553 = vunpack.c.l.b16 %v532
        %v554 = vunpack.c.h.b16 %v532
        %v555 = vunpack.c.l.b16 %v533
        %v556 = vunpack.c.h.b16 %v533
        %v557 = vunpack.c.l.b16 %v534
        %v558 = vunpack.c.h.b16 %v534
        %v559 = vpack.c.b16 %v543, %v543
        %v560 = vpack.c.b16 %v544, %v544
        %v561 = vpack.c.b16 %v545, %v545
        %v562 = vpack.c.b16 %v546, %v546
        %v563 = vpack.c.b16 %v547, %v547
        %v564 = vpack.c.b16 %v548, %v548
        %v565 = vpack.c.b16 %v549, %v549
        %v566 = vpack.c.b16 %v550, %v550
        %v567 = vpack.c.b16 %v551, %v551
        %v568 = vpack.c.b16 %v552, %v552
        %v569 = vpack.c.b16 %v553, %v553
        %v570 = vpack.c.b16 %v554, %v554
        %v571 = vpack.c.b16 %v555, %v555
        %v572 = vpack.c.b16 %v556, %v556
        %v573 = vpack.c.b16 %v557, %v557
        %v574 = vpack.c.b16 %v558, %v558
        %591 = vst [vmem:[%s295] sm:$0xf] %v559
        %592 = vst [vmem:[%s295 + $0x4] sm:$0xf] %v560
        %593 = vst [vmem:[%s295 + $0x8] sm:$0xf] %v561
        %594 = vst [vmem:[%s295 + $0xc] sm:$0xf] %v562
        %595 = vst [vmem:[%s295 + $0x10] sm:$0xf] %v563
        %596 = vst [vmem:[%s295 + $0x14] sm:$0xf] %v564
        %597 = vst [vmem:[%s295 + $0x18] sm:$0xf] %v565
        %598 = vst [vmem:[%s295 + $0x1c] sm:$0xf] %v566
        %599 = vst [vmem:[%s295 + $0x20] sm:$0xf] %v567
        %600 = vst [vmem:[%s295 + $0x24] sm:$0xf] %v568
        %601 = vst [vmem:[%s295 + $0x28] sm:$0xf] %v569
        %602 = vst [vmem:[%s295 + $0x2c] sm:$0xf] %v570
        %603 = vst [vmem:[%s295 + $0x30] sm:$0xf] %v571
        %604 = vst [vmem:[%s295 + $0x34] sm:$0xf] %v572
        %605 = vst [vmem:[%s295 + $0x38] sm:$0xf] %v573
        %606 = vst [vmem:[%s295 + $0x3c] sm:$0xf] %v574
        %p607 = scmp.eq.s32.totalorder %s30, 0
        // Predicated region
        $region49: #{tpu_custom_call.1} parent=35 // pred_check
          %p608 = pneg %p607
        $region50: #{tpu_custom_call.1} parent=35 // pred_check_branch
          %610 = sbr.rel (%p608) target = $region52
        $region51: #{tpu_custom_call.1} parent=35 // pred_region
          %v611 = vld [vmem:[#allocation2] sm:$0xf]
          %v612 = vld [vmem:[#allocation2 + $0x4] sm:$0xf]
          %v613 = vld [vmem:[#allocation2 + $0x8] sm:$0xf]
          %v614 = vld [vmem:[#allocation2 + $0xc] sm:$0xf]
          %v615 = vld [vmem:[#allocation2 + $0x10] sm:$0xf]
          %v616 = vld [vmem:[#allocation2 + $0x14] sm:$0xf]
          %v617 = vld [vmem:[#allocation2 + $0x18] sm:$0xf]
          %v618 = vld [vmem:[#allocation2 + $0x1c] sm:$0xf]
          %v619 = vld [vmem:[#allocation2 + $0x20] sm:$0xf]
          %v620 = vld [vmem:[#allocation2 + $0x24] sm:$0xf]
          %v621 = vld [vmem:[#allocation2 + $0x28] sm:$0xf]
          %v622 = vld [vmem:[#allocation2 + $0x2c] sm:$0xf]
          %v623 = vld [vmem:[#allocation2 + $0x30] sm:$0xf]
          %v624 = vld [vmem:[#allocation2 + $0x34] sm:$0xf]
          %v625 = vld [vmem:[#allocation2 + $0x38] sm:$0xf]
          %v626 = vld [vmem:[#allocation2 + $0x3c] sm:$0xf]
          %v627 = vld [vmem:[#allocation7] sm:$0xf]
          %v628 = vld [vmem:[#allocation7 + $0x4] sm:$0xf]
          %v629 = vld [vmem:[#allocation7 + $0x8] sm:$0xf]
          %v630 = vld [vmem:[#allocation7 + $0xc] sm:$0xf]
          %v631 = vld [vmem:[#allocation7 + $0x10] sm:$0xf]
          %v632 = vld [vmem:[#allocation7 + $0x14] sm:$0xf]
          %v633 = vld [vmem:[#allocation7 + $0x18] sm:$0xf]
          %v634 = vld [vmem:[#allocation7 + $0x1c] sm:$0xf]
          %v635 = vld [vmem:[#allocation7 + $0x20] sm:$0xf]
          %v636 = vld [vmem:[#allocation7 + $0x24] sm:$0xf]
          %v637 = vld [vmem:[#allocation7 + $0x28] sm:$0xf]
          %v638 = vld [vmem:[#allocation7 + $0x2c] sm:$0xf]
          %v639 = vld [vmem:[#allocation7 + $0x30] sm:$0xf]
          %v640 = vld [vmem:[#allocation7 + $0x34] sm:$0xf]
          %v641 = vld [vmem:[#allocation7 + $0x38] sm:$0xf]
          %v642 = vld [vmem:[#allocation7 + $0x3c] sm:$0xf]
          %v643 = vld [vmem:[%s3] sm:$0x1]
          %v645 = vlaneseq
          %v646 = vshrl.u32 %v645, 7
          %v647 = vsub.s32 0, %v646
          %v648 = vrot.slane %v643, %v647
          %v666 = vunpack.c.l.b16 %v611
          %v667 = vunpack.c.l.b16 %v612
          %v668 = vunpack.c.l.b16 %v613
          %v669 = vunpack.c.l.b16 %v614
          %v670 = vunpack.c.l.b16 %v615
          %v671 = vunpack.c.l.b16 %v616
          %v672 = vunpack.c.l.b16 %v617
          %v673 = vunpack.c.l.b16 %v618
          %v674 = vunpack.c.l.b16 %v619
          %v675 = vunpack.c.l.b16 %v620
          %v676 = vunpack.c.l.b16 %v621
          %v677 = vunpack.c.l.b16 %v622
          %v678 = vunpack.c.l.b16 %v623
          %v679 = vunpack.c.l.b16 %v624
          %v680 = vunpack.c.l.b16 %v625
          %v681 = vunpack.c.l.b16 %v626
          %v682 = vpack.c.b16 %v667, %v666
          %v683 = vpack.c.b16 %v669, %v668
          %v684 = vpack.c.b16 %v671, %v670
          %v685 = vpack.c.b16 %v673, %v672
          %v686 = vpack.c.b16 %v675, %v674
          %v687 = vpack.c.b16 %v677, %v676
          %v688 = vpack.c.b16 %v679, %v678
          %v689 = vpack.c.b16 %v681, %v680
          %v714 = vunpack.c.l.b16 %v627
          %v715 = vunpack.c.l.b16 %v628
          %v716 = vunpack.c.l.b16 %v629
          %v717 = vunpack.c.l.b16 %v630
          %v718 = vunpack.c.l.b16 %v631
          %v719 = vunpack.c.l.b16 %v632
          %v720 = vunpack.c.l.b16 %v633
          %v721 = vunpack.c.l.b16 %v634
          %v722 = vunpack.c.l.b16 %v635
          %v723 = vunpack.c.l.b16 %v636
          %v724 = vunpack.c.l.b16 %v637
          %v725 = vunpack.c.l.b16 %v638
          %v726 = vunpack.c.l.b16 %v639
          %v727 = vunpack.c.l.b16 %v640
          %v728 = vunpack.c.l.b16 %v641
          %v729 = vunpack.c.l.b16 %v642
          %v730 = vpack.c.b16 %v715, %v714
          %v731 = vpack.c.b16 %v717, %v716
          %v732 = vpack.c.b16 %v719, %v718
          %v733 = vpack.c.b16 %v721, %v720
          %v734 = vpack.c.b16 %v723, %v722
          %v735 = vpack.c.b16 %v725, %v724
          %v736 = vpack.c.b16 %v727, %v726
          %v737 = vpack.c.b16 %v729, %v728
          %746 = vmatprep.subr.bf16.mxu0 0
          %747 = vmatpush1.bf16.msra.mxu0 %v730
          %748 = vmatprep.subr.bf16.mxu0 0
          %749 = vmatpush1.bf16.msra.mxu0 %v731
          %750 = vmatprep.subr.bf16.mxu0 0
          %751 = vmatpush1.bf16.msra.mxu0 %v732
          %752 = vmatprep.subr.bf16.mxu0 0
          %753 = vmatpush1.bf16.msra.mxu0 %v733
          %754 = vmatprep.subr.bf16.mxu0 0
          %755 = vmatpush1.bf16.msra.mxu0 %v734
          %756 = vmatprep.subr.bf16.mxu0 0
          %757 = vmatpush1.bf16.msra.mxu0 %v735
          %758 = vmatprep.subr.bf16.mxu0 0
          %759 = vmatpush1.bf16.msra.mxu0 %v736
          %760 = vmatprep.subr.bf16.mxu0 0
          %761 = vmatpush1.bf16.msra.mxu0 %v737
          %762 = vmatprep.subr.bf16.mxu0 0
          %763 = vmatpush1.bf16.msra.mxu0 0
          %764 = vmatprep.subr.bf16.mxu0 0
          %765 = vmatpush1.bf16.msra.mxu0 0
          %766 = vmatprep.subr.bf16.mxu0 0
          %767 = vmatpush1.bf16.msra.mxu0 0
          %768 = vmatprep.subr.bf16.mxu0 0
          %769 = vmatpush1.bf16.msra.mxu0 0
          %770 = vmatprep.subr.bf16.mxu0 0
          %771 = vmatpush1.bf16.msra.mxu0 0
          %772 = vmatprep.subr.bf16.mxu0 0
          %773 = vmatpush1.bf16.msra.mxu0 0
          %774 = vmatprep.subr.bf16.mxu0 0
          %775 = vmatpush1.bf16.msra.mxu0 0
          %776 = vmatprep.subr.bf16.mxu0 0
          %777 = vmatpush1.bf16.msra.mxu0 0
          %778 = vmatprep.mubr.bf16.mxu0 0
          %779 = vmatmul.mubr.bf16.gmra.mrb[0].mxu0 %v682
          %v780 = vpop.f32.mrb[0].mxu0
          %v781 = vadd.f32 %v648, %v780
          %v782 = vpop.f32.mrb[0].mxu0
          %v783 = vpop.f32.mrb[0].mxu0
          %v784 = vadd.f32 %v648, %v783
          %v785 = vpop.f32.mrb[0].mxu0
          %786 = vmatprep.mubr.bf16.mxu0 0
          %787 = vmatmul.mubr.bf16.gmra.mrb[0].mxu0 %v683
          %v788 = vpop.f32.mrb[0].mxu0
          %v789 = vadd.f32 %v648, %v788
          %v790 = vpop.f32.mrb[0].mxu0
          %v791 = vpop.f32.mrb[0].mxu0
          %v792 = vadd.f32 %v648, %v791
          %v793 = vpop.f32.mrb[0].mxu0
          %794 = vmatprep.mubr.bf16.mxu0 0
          %795 = vmatmul.mubr.bf16.gmra.mrb[0].mxu0 %v684
          %v796 = vpop.f32.mrb[0].mxu0
          %v797 = vadd.f32 %v648, %v796
          %v798 = vpop.f32.mrb[0].mxu0
          %v799 = vpop.f32.mrb[0].mxu0
          %v800 = vadd.f32 %v648, %v799
          %v801 = vpop.f32.mrb[0].mxu0
          %802 = vmatprep.mubr.bf16.mxu0 0
          %803 = vmatmul.mubr.bf16.gmra.mrb[0].mxu0 %v685
          %v804 = vpop.f32.mrb[0].mxu0
          %v805 = vadd.f32 %v648, %v804
          %v806 = vpop.f32.mrb[0].mxu0
          %v807 = vpop.f32.mrb[0].mxu0
          %v808 = vadd.f32 %v648, %v807
          %v809 = vpop.f32.mrb[0].mxu0
          %810 = vmatprep.mubr.bf16.mxu0 0
          %811 = vmatmul.mubr.bf16.gmra.mrb[0].mxu0 %v686
          %v812 = vpop.f32.mrb[0].mxu0
          %v813 = vadd.f32 %v648, %v812
          %v814 = vpop.f32.mrb[0].mxu0
          %v815 = vpop.f32.mrb[0].mxu0
          %v816 = vadd.f32 %v648, %v815
          %v817 = vpop.f32.mrb[0].mxu0
          %818 = vmatprep.mubr.bf16.mxu0 0
          %819 = vmatmul.mubr.bf16.gmra.mrb[0].mxu0 %v687
          %v820 = vpop.f32.mrb[0].mxu0
          %v821 = vadd.f32 %v648, %v820
          %v822 = vpop.f32.mrb[0].mxu0
          %v823 = vpop.f32.mrb[0].mxu0
          %v824 = vadd.f32 %v648, %v823
          %v825 = vpop.f32.mrb[0].mxu0
          %826 = vmatprep.mubr.bf16.mxu0 0
          %827 = vmatmul.mubr.bf16.gmra.mrb[0].mxu0 %v688
          %v828 = vpop.f32.mrb[0].mxu0
          %v829 = vadd.f32 %v648, %v828
          %v830 = vpop.f32.mrb[0].mxu0
          %v831 = vpop.f32.mrb[0].mxu0
          %v832 = vadd.f32 %v648, %v831
          %v833 = vpop.f32.mrb[0].mxu0
          %834 = vmatprep.mubr.bf16.mxu0 0
          %835 = vmatmul.mubr.bf16.gmra.mrb[0].mxu0 %v689
          %v836 = vpop.f32.mrb[0].mxu0
          %v837 = vadd.f32 %v648, %v836
          %v838 = vpop.f32.mrb[0].mxu0
          %v839 = vpop.f32.mrb[0].mxu0
          %v840 = vadd.f32 %v648, %v839
          %v841 = vpop.f32.mrb[0].mxu0
          %842 = vdwg.mxu0
          %843 = vst [vmem:[#allocation9] sm:$0xff] %v781
          %844 = vst [vmem:[#allocation9 + $0x8] sm:$0xff] %v784
          %845 = vst [vmem:[#allocation9 + $0x10] sm:$0xff] %v789
          %846 = vst [vmem:[#allocation9 + $0x18] sm:$0xff] %v792
          %847 = vst [vmem:[#allocation9 + $0x20] sm:$0xff] %v797
          %848 = vst [vmem:[#allocation9 + $0x28] sm:$0xff] %v800
          %849 = vst [vmem:[#allocation9 + $0x30] sm:$0xff] %v805
          %850 = vst [vmem:[#allocation9 + $0x38] sm:$0xff] %v808
          %851 = vst [vmem:[#allocation9 + $0x40] sm:$0xff] %v813
          %852 = vst [vmem:[#allocation9 + $0x48] sm:$0xff] %v816
          %853 = vst [vmem:[#allocation9 + $0x50] sm:$0xff] %v821
          %854 = vst [vmem:[#allocation9 + $0x58] sm:$0xff] %v824
          %855 = vst [vmem:[#allocation9 + $0x60] sm:$0xff] %v829
          %856 = vst [vmem:[#allocation9 + $0x68] sm:$0xff] %v832
          %857 = vst [vmem:[#allocation9 + $0x70] sm:$0xff] %v837
          %858 = vst [vmem:[#allocation9 + $0x78] sm:$0xff] %v840
        $region52: #{tpu_custom_call.1} parent=35 // pred_fallthru
          _
        %s859 = sand.u32 %s141, 1
        %s860 = scalar_lea.sflag [#allocation4], %s859
        %s861 = sand.u32 %s141, 1
        %s862 = smul.addr %s861, 64
        %s863 = scalar_lea.vmem [#allocation8], %s862
        // Predicated region
        $region53: #{tpu_custom_call.1} parent=35 // pred_check
          %p864 = pneg %p151
        $region54: #{tpu_custom_call.1} parent=35 // pred_check_branch
          %866 = sbr.rel (%p864) target = $region56
        $region55: #{tpu_custom_call.1} parent=35 // pred_region
          %s867 = smul.u32 16, %s29
          %s869 = ssub.s32 1024, 1024
          %870 = vsyncadd %s860, %s869
          %s871 = smul.addr %s30, 16
          %s872 = sadd.s32 %s867, %s871
          %s873 = smul.addr %s872, 64
          %s874 = scalar_lea.hbm %s4, %s873
          %s875 = sshll.u32 %s863, 4
          %s876 = int_to_ptr.vmem [resolvable:$true] %s875
          %881 = dma.vmem_to_hbm [thread:$0]  %s876, 1024, %s874, %s860, 64, 64, 4
        $region56: #{tpu_custom_call.1} parent=35 // pred_fallthru
          _
        // Predicated region
        $region57: #{tpu_custom_call.1} parent=35 // pred_check
          %p882 = pneg %p177
        $region58: #{tpu_custom_call.1} parent=35 // pred_check_branch
          %884 = sbr.rel (%p882) target = $region60
        $region59: #{tpu_custom_call.1} parent=35 // pred_region
          %s885 = smul.u32 16, %s29
          %s887 = ssub.s32 2048, 2048
          %888 = vsyncadd [#allocation10], %s887
          %s889 = smul.addr %s885, 128
          %s890 = scalar_lea.hbm %s5, %s889
          %s891 = sshll.u32 [#allocation9], 4
          %s892 = int_to_ptr.vmem [resolvable:$true] %s891
          %897 = dma.vmem_to_hbm [thread:$0]  %s892, 2048, %s890, [#allocation10], 128, 128, 8
        $region60: #{tpu_custom_call.1} parent=35 // pred_fallthru
          _
        // Predicated region
        $region61: #{tpu_custom_call.1} parent=35 // pred_check
          %p898 = pneg %p177
        $region62: #{tpu_custom_call.1} parent=35 // pred_check_branch
          %900 = sbr.rel (%p898) target = $region64
        $region63: #{tpu_custom_call.1} parent=35 // pred_region
          %901 = dma.done [#allocation10], 2048
        $region64: #{tpu_custom_call.1} parent=35 // pred_fallthru
          _
      $region36: #{tpu_custom_call.1} parent=5 // pred_fallthru
        _
      %p902 = scmp.le.s32.totalorder 2, %s20
      // Predicated region
      $region65: #{tpu_custom_call.1} parent=5 // pred_check
        %p903 = pneg %p902
      $region66: #{tpu_custom_call.1} parent=5 // pred_check_branch
        %905 = sbr.rel (%p903) target = $region68
      $region67: #{tpu_custom_call.1} parent=5 // pred_region
        %s906 = ssub.s32 %s20, 2
        // Predicated region
        $region69: #{tpu_custom_call.1} parent=67 // pred_check
          %p907 = pneg %p157
        $region70: #{tpu_custom_call.1} parent=67 // pred_check_branch
          %909 = sbr.rel (%p907) target = $region72
        $region71: #{tpu_custom_call.1} parent=67 // pred_region
          %s910 = sand.u32 %s142, 1
          %s911 = scalar_lea.sflag [#allocation4], %s910
          %s912 = sand.u32 %s142, 1
          %s913 = smul.addr %s912, 64
          %s914 = scalar_lea.vmem [#allocation8], %s913
          %915 = dma.done %s911, 1024
        $region72: #{tpu_custom_call.1} parent=67 // pred_fallthru
          _
      $region68: #{tpu_custom_call.1} parent=5 // pred_fallthru
        _
    $region6: #{tpu_custom_call.1} parent=1 // loop_footer
      %s24 = sadd.s32 1, %s20
    $region7: #{tpu_custom_call.1} parent=1 // loop_footer_branch
      %19 = sbr.rel target = $region3
    $region8: #{tpu_custom_call.1} parent=1 // loop_exit
      _
    %916 = vsyncpa [#allocation3], 1
    %s917 = scalar_lea.sflag [#allocation3], 1
    %918 = vsyncpa %s917, 1
    %919 = vsyncpa [#allocation6], 1
    %s920 = scalar_lea.sflag [#allocation6], 1
    %921 = vsyncpa %s920, 1
    %922 = vsyncpa [#allocation4], 1
    %s923 = scalar_lea.sflag [#allocation4], 1
    %924 = vsyncpa %s923, 1
    %925 = vsyncpa [#allocation10], 1

</llo_original>
